<compile_context>
chip_gen: v6e
topology: v6e:2x2x1
jax: 0.10.0
libtpu: 0.0.40
codegen_flags: <defaults>
</compile_context>

<pallas_src>
import jax
import jax.numpy as jnp
from jax.experimental import pallas as pl
from jax.experimental.pallas import tpu as pltpu


# ----------------------- kernel 1: fused whole-sequence input projection ----
def _input_proj_kernel(x_ref, w_ref, b_ref, o_ref):
    # x_ref: [T*B, F_in], w_ref: [F_in, E*4H], b_ref: [1, E*4H]
    o_ref[...] = (
        jnp.dot(x_ref[...], w_ref[...], preferred_element_type=jnp.float32)
        + b_ref[...]
    ).astype(o_ref.dtype)


# ----------------------- kernel 2: recurrent mixture-of-weights LSTM --------
def _make_lstm_kernel(num_experts: int, hidden: int):
    H = hidden
    H4 = 4 * hidden
    E = num_experts

    def kernel(xw_ref, wh_ref, coef_ref, h0_ref, c0_ref,
               out_ref, hT_ref, cT_ref, h_scr, c_scr):
        t = pl.program_id(0)

        @pl.when(t == 0)
        def _():
            h_scr[...] = h0_ref[...]
            c_scr[...] = c0_ref[...]

        h = h_scr[...]
        c = c_scr[...]

        # One lane-concatenated matmul across ALL experts: [B, E*4H].
        gates_all = xw_ref[...] + jnp.dot(
            h, wh_ref[...], preferred_element_type=jnp.float32)

        # Per-batch mixture of experts: sum_e coef[:, e] * gates_all[:, e-block]
        gates = coef_ref[:, 0:1] * gates_all[:, 0:H4]
        for e in range(1, E):                                  # static, unrolled
            gates = gates + coef_ref[:, e:e + 1] * gates_all[:, e * H4:(e + 1) * H4]

        i_g = jax.nn.sigmoid(gates[:, 0 * H:1 * H])
        f_g = jax.nn.sigmoid(gates[:, 1 * H:2 * H])
        g_g = jnp.tanh(gates[:, 2 * H:3 * H])
        o_g = jax.nn.sigmoid(gates[:, 3 * H:4 * H])

        c_new = f_g * c + i_g * g_g
        h_new = o_g * jnp.tanh(c_new)

        h_scr[...] = h_new
        c_scr[...] = c_new
        out_ref[...] = h_new.astype(out_ref.dtype)
        hT_ref[...] = h_new.astype(hT_ref.dtype)
        cT_ref[...] = c_new.astype(cT_ref.dtype)

    return kernel


def mow_lstm_forward(x, hidden, coef, wx, bx, wh, bh):
    """Forward pass of mowLSTM_ (batch_first=False, tie_weights=True / IDGate).

    x      : [T, B, F_in]
    hidden : tuple (h0, c0), each [1, B, H]
    coef   : [B, E]              (IDGate: gate output == supplied coef)
    wx     : [E, 4H, F_in]       (PyTorch nn.Linear layout per expert)
    bx     : [E, 4H]
    wh     : [E, 4H, H]
    bh     : [E, 4H]
    Returns (output [T, B, H], (h_T [1, B, H], c_T [1, B, H])).
    """
    h0, c0 = hidden
    T, B, F_in = x.shape
    E, H4, _ = wx.shape
    H = H4 // 4
    EH4 = E * H4

    # Lane-concatenate experts (expert-major): W_cat[f, e*4H + g] = W[e, g, f].
    wx_cat = jnp.transpose(wx, (2, 0, 1)).reshape(F_in, EH4)
    wh_cat = jnp.transpose(wh, (2, 0, 1)).reshape(H, EH4)
    b_cat = (bx + bh).reshape(1, EH4)      # both biases get mixed by same coef

    x_flat = x.reshape(T * B, F_in).astype(jnp.float32)

    # ---- kernel 1: whole-sequence input projection (one lane-dense matmul) --
    # TODO(synk): tile over rows of x_flat with a grid for long sequences /
    # large batches (here T*B is tiny, a single block is optimal).
    xw = pl.pallas_call(
        _input_proj_kernel,
        out_shape=jax.ShapeDtypeStruct((T * B, EH4), jnp.float32),
    )(x_flat, wx_cat, b_cat)
    xw = xw.reshape(T, B, EH4)

    # ---- kernel 2: sequential recurrence over time --------------------------
    out_seq, h_T, c_T = pl.pallas_call(
        _make_lstm_kernel(E, H),
        out_shape=(
            jax.ShapeDtypeStruct((T, B, H), jnp.float32),
            jax.ShapeDtypeStruct((B, H), jnp.float32),
            jax.ShapeDtypeStruct((B, H), jnp.float32),
        ),
        grid=(T,),
        in_specs=[
            pl.BlockSpec((pl.Squeezed(), B, EH4), lambda t: (t, 0, 0)),  # xw[t]
            pl.BlockSpec((H, EH4), lambda t: (0, 0)),    # Wh_cat (resident)
            pl.BlockSpec((B, E), lambda t: (0, 0)),      # coef   (resident)
            pl.BlockSpec((B, H), lambda t: (0, 0)),      # h0
            pl.BlockSpec((B, H), lambda t: (0, 0)),      # c0
        ],
        out_specs=(
            pl.BlockSpec((pl.Squeezed(), B, H), lambda t: (t, 0, 0)),    # h_t stack
            pl.BlockSpec((B, H), lambda t: (0, 0)),      # final h
            pl.BlockSpec((B, H), lambda t: (0, 0)),      # final c
        ),
        scratch_shapes=[
            pltpu.VMEM((B, H), jnp.float32),             # h carry
            pltpu.VMEM((B, H), jnp.float32),             # c carry
        ],
        compiler_params=pltpu.CompilerParams(
            dimension_semantics=("arbitrary",),          # true recurrence
        ),
    )(xw, wh_cat, coef.astype(jnp.float32),
      h0.reshape(B, H).astype(jnp.float32),
      c0.reshape(B, H).astype(jnp.float32))

    return out_seq, (h_T.reshape(1, B, H), c_T.reshape(1, B, H))


# ----------------------------- pure-JAX reference ---------------------------
def _reference(x, hidden, coef, wx, bx, wh, bh):
    h0, c0 = hidden
    T, B, F_in = x.shape
    E, H4, _ = wx.shape
    H = H4 // 4
    h = h0[0]
    c = c0[0]
    outs = []
    for t in range(T):
        gx = jnp.einsum('bf,egf->beg', x[t], wx) + bx[None]   # [B, E, 4H]
        gh = jnp.einsum('bh,egh->beg', h, wh) + bh[None]
        gates = jnp.sum(coef[:, :, None] * (gx + gh), axis=1)  # [B, 4H]
        i = jax.nn.sigmoid(gates[:, 0:H])
        f = jax.nn.sigmoid(gates[:, H:2 * H])
        g = jnp.tanh(gates[:, 2 * H:3 * H])
        o = jax.nn.sigmoid(gates[:, 3 * H:4 * H])
        c = f * c + i * g
        h = o * jnp.tanh(c)
        outs.append(h)
    return jnp.stack(outs, 0), (h[None], c[None])


if __name__ == "__main__":
    key = jax.random.PRNGKey(0)
    k_x, k_h, k_c, k_coef, k_wx, k_bx, k_wh, k_bh = jax.random.split(key, 8)

    T, B = 8, 4
    input_size, hidden_size, num_experts = 16, 32, 2
    H4 = 4 * hidden_size
    stdv = 1.0 / (hidden_size ** 0.5)

    x = jax.random.normal(k_x, (T, B, input_size), jnp.float32)
    h0 = 0.1 * jax.random.normal(k_h, (1, B, hidden_size), jnp.float32)
    c0 = 0.1 * jax.random.normal(k_c, (1, B, hidden_size), jnp.float32)
    coef = jax.nn.softmax(
        jax.random.normal(k_coef, (B, num_experts), jnp.float32), axis=-1)

    wx = jax.random.uniform(k_wx, (num_experts, H4, input_size), jnp.float32, -stdv, stdv)
    bx = jax.random.uniform(k_bx, (num_experts, H4), jnp.float32, -stdv, stdv)
    wh = jax.random.uniform(k_wh, (num_experts, H4, hidden_size), jnp.float32, -stdv, stdv)
    bh = jax.random.uniform(k_bh, (num_experts, H4), jnp.float32, -stdv, stdv)

    out, (h_T, c_T) = mow_lstm_forward(x, (h0, c0), coef, wx, bx, wh, bh)
    out = jax.block_until_ready(out)
    h_T = jax.block_until_ready(h_T)
    c_T = jax.block_until_ready(c_T)

    ref_out, (ref_h, ref_c) = _reference(x, (h0, c0), coef, wx, bx, wh, bh)

    ok = (bool(jnp.allclose(out, ref_out, atol=1e-4, rtol=1e-4))
          and bool(jnp.allclose(h_T, ref_h, atol=1e-4, rtol=1e-4))
          and bool(jnp.allclose(c_T, ref_c, atol=1e-4, rtol=1e-4)))
    assert ok, "Pallas mowLSTM_ output mismatch vs reference"
    print("KERNEL_OK")
</pallas_src>

<mosaic_0001>
module attributes {stable_mosaic.version = 11 : i64} {
  func.func @_input_proj_kernel(%arg0: memref<32x16xf32, #tpu.memory_space<vmem>>, %arg1: memref<16x256xf32, #tpu.memory_space<vmem>>, %arg2: memref<1x256xf32, #tpu.memory_space<vmem>>, %arg3: memref<32x256xf32, #tpu.memory_space<vmem>>) attributes {dimension_semantics = [], scalar_prefetch = 0 : i64, scratch_operands = 0 : i64, tpu.core_type = #tpu.core_type<tc>} {
    %c0 = arith.constant 0 : index
    %c0_0 = arith.constant 0 : index
    %0 = vector.load %arg0[%c0, %c0_0] : memref<32x16xf32, #tpu.memory_space<vmem>>, vector<32x16xf32>
    %c0_1 = arith.constant 0 : index
    %c0_2 = arith.constant 0 : index
    %1 = vector.load %arg1[%c0_1, %c0_2] : memref<16x256xf32, #tpu.memory_space<vmem>>, vector<16x256xf32>
    %cst = arith.constant dense<0.000000e+00> : vector<32x256xf32>
    %2 = tpu.matmul %0, %1, %cst {dimension_numbers = #tpu.dot_dimension_numbers<[1], [0], [0], [1], [0, 0, 1, 1], [], []>} : vector<32x16xf32>, vector<16x256xf32>, vector<32x256xf32> -> vector<32x256xf32>
    %c0_3 = arith.constant 0 : index
    %c0_4 = arith.constant 0 : index
    %3 = vector.load %arg2[%c0_3, %c0_4] : memref<1x256xf32, #tpu.memory_space<vmem>>, vector<1x256xf32>
    %4 = vector.broadcast %3 : vector<1x256xf32> to vector<32x256xf32>
    %5 = arith.addf %2, %4 : vector<32x256xf32>
    %c0_5 = arith.constant 0 : index
    %c0_6 = arith.constant 0 : index
    %6 = vector.load %arg3[%c0_5, %c0_6] : memref<32x256xf32, #tpu.memory_space<vmem>>, vector<32x256xf32>
    tpu.vector_store %arg3[%c0_5, %c0_6], %5 {strides = array<i32>} : memref<32x256xf32, #tpu.memory_space<vmem>>, vector<32x256xf32>,
    return
  }
}

</mosaic_0001>

<llo_original>
// kernel: tpu_custom_call.1
$region0: #{tpu_custom_call.1}
  #allocation0 [shape = 'u32[]', space=smem, size = 0x4, offset = 0x4, fixed_abs, tag = 'smem constant byte address 0x4 - core index']
  #allocation1 [shape = 'u32[144,128]{1,0:T(1,128)}', space=vmem, size = 0x12000, scoped, tag = 'internal scratch']
  %s0 = inlined_call_operand.vmem [shape: f32[32,16], index: 0, kind: input, shape index: {}]
  %s1 = inlined_call_operand.vmem [shape: f32[16,256], index: 1, kind: input, shape index: {}]
  %s2 = inlined_call_operand.vmem [shape: f32[1,256], index: 2, kind: input, shape index: {}]
  %s3 = inlined_call_operand.hbm [shape: f32[32,256], index: 3, kind: output, shape index: {}]
  %s4 = sld [smem:[#allocation0]]
  $region22: #{tpu_custom_call.1} parent=0
    _
  %s6 = ssub.s32 1, %s4
  %s7 = scalar_select 0, %s6, %s4
  $region1: #{tpu_custom_call.1} parent=0
    #allocation2 [shape = 'u8[32768]{0}', space=vmem, size = 0x8000, scoped, tag = 'output window, operand 0, single buffered']
    #allocation3 [shape = 's32[1]{0}', space=sflag, size = 0x4, scoped, tag = 'scoped memory for tpu_custom_call.1']
    %8 = vsyncpa [#allocation3], 0
    // Predicated region
    $region2: #{tpu_custom_call.1} parent=1 // pred_check
      _
    $region3: #{tpu_custom_call.1} parent=1 // pred_check_branch
      %10 = sbr.rel (0) target = $region5
    $region4: #{tpu_custom_call.1} parent=1 // pred_region
      _
    $region5: #{tpu_custom_call.1} parent=1 // pred_fallthru
      _
    // Predicated region
    $region6: #{tpu_custom_call.1} parent=1 // pred_check
      _
    $region7: #{tpu_custom_call.1} parent=1 // pred_check_branch
      %12 = sbr.rel (0) target = $region9
    $region8: #{tpu_custom_call.1} parent=1 // pred_region
      _
    $region9: #{tpu_custom_call.1} parent=1 // pred_fallthru
      _
    // Predicated region
    $region10: #{tpu_custom_call.1} parent=1 // pred_check
      _
    $region11: #{tpu_custom_call.1} parent=1 // pred_check_branch
      %14 = sbr.rel (0) target = $region13
    $region12: #{tpu_custom_call.1} parent=1 // pred_region
      _
    $region13: #{tpu_custom_call.1} parent=1 // pred_fallthru
      _
    %v15 = vld [vmem:[%s0] sm:$0xff]
    %v16 = vld [vmem:[%s0 + $0x8] sm:$0xff]
    %v17 = vld [vmem:[%s0 + $0x10] sm:$0xff]
    %v18 = vld [vmem:[%s0 + $0x18] sm:$0xff]
    %v19 = vld [vmem:[%s1] sm:$0xff]
    %v20 = vld [vmem:[%s1 + $0x8] sm:$0xff]
    %v21 = vld [vmem:[%s1 + $0x10] sm:$0xff]
    %v22 = vld [vmem:[%s1 + $0x18] sm:$0xff]
    %v23 = vld [vmem:[%s2] sm:$0x3]
    %v25 = vlaneseq
    %v26 = vshrl.u32 %v25, 7
    %v27 = vsub.s32 0, %v26
    %v28 = vrot.slane %v23, %v27
    %v29 = vlaneseq
    %v30 = vshrl.u32 %v29, 7
    %v31 = vsub.s32 1, %v30
    %v32 = vrot.slane %v23, %v31
    %vm35 = vcmask 130048
    %v37 = vsel %vm35, %v15, 0
    %v40 = vsel %vm35, %v16, 0
    %v43 = vsel %vm35, %v17, 0
    %v46 = vsel %vm35, %v18, 0
    %48 = vmatprep.subr.mxu0 0.0
    %49 = vmatpush1.msra.mxu0 0.0
    %50 = vmatprep.subr.mxu0 0.0
    %51 = vmatpush1.msra.mxu0 0.0
    %52 = vmatprep.subr.mxu0 0.0
    %53 = vmatpush1.msra.mxu0 0.0
    %54 = vmatprep.subr.mxu0 0.0
    %55 = vmatpush1.msra.mxu0 0.0
    %56 = vmatprep.subr.mxu0 0.0
    %57 = vmatpush1.msra.mxu0 0.0
    %58 = vmatprep.subr.mxu0 0.0
    %59 = vmatpush1.msra.mxu0 0.0
    %60 = vmatprep.subr.mxu0 0.0
    %61 = vmatpush1.msra.mxu0 0.0
    %62 = vmatprep.subr.mxu0 0.0
    %63 = vmatpush1.msra.mxu0 0.0
    %64 = vmatprep.subr.mxu0 0.0
    %65 = vmatpush1.msra.mxu0 0.0
    %66 = vmatprep.subr.mxu0 0.0
    %67 = vmatpush1.msra.mxu0 0.0
    %68 = vmatprep.subr.mxu0 0.0
    %69 = vmatpush1.msra.mxu0 0.0
    %70 = vmatprep.subr.mxu0 0.0
    %71 = vmatpush1.msra.mxu0 0.0
    %72 = vmatprep.subr.mxu0 0.0
    %73 = vmatpush1.msra.mxu0 0.0
    %74 = vmatprep.subr.mxu0 0.0
    %75 = vmatpush1.msra.mxu0 0.0
    %76 = vmatprep.subr.mxu0 %v22
    %77 = vmatpush1.msra.mxu0 %v21
    %78 = vmatprep.subr.mxu0 %v20
    %79 = vmatpush1.msra.mxu0 %v19
    %80 = vmatprep.subr.mxu0 0.0
    %81 = vmatpush2.msra.mxu0 0.0
    %82 = vmatprep.subr.mxu0 0.0
    %83 = vmatpush2.msra.mxu0 0.0
    %84 = vmatprep.subr.mxu0 0.0
    %85 = vmatpush2.msra.mxu0 0.0
    %86 = vmatprep.subr.mxu0 0.0
    %87 = vmatpush2.msra.mxu0 0.0
    %88 = vmatprep.subr.mxu0 0.0
    %89 = vmatpush2.msra.mxu0 0.0
    %90 = vmatprep.subr.mxu0 0.0
    %91 = vmatpush2.msra.mxu0 0.0
    %92 = vmatprep.subr.mxu0 0.0
    %93 = vmatpush2.msra.mxu0 0.0
    %94 = vmatprep.subr.mxu0 0.0
    %95 = vmatpush2.msra.mxu0 0.0
    %96 = vmatprep.subr.mxu0 0.0
    %97 = vmatpush2.msra.mxu0 0.0
    %98 = vmatprep.subr.mxu0 0.0
    %99 = vmatpush2.msra.mxu0 0.0
    %100 = vmatprep.subr.mxu0 0.0
    %101 = vmatpush2.msra.mxu0 0.0
    %102 = vmatprep.subr.mxu0 0.0
    %103 = vmatpush2.msra.mxu0 0.0
    %104 = vmatprep.subr.mxu0 0.0
    %105 = vmatpush2.msra.mxu0 0.0
    %106 = vmatprep.subr.mxu0 0.0
    %107 = vmatpush2.msra.mxu0 0.0
    %108 = vmatprep.subr.mxu0 0.0
    %109 = vmatpush2.msra.mxu0 0.0
    %110 = vmatprep.subr.mxu0 0.0
    %111 = vmatpush2.msra.mxu0 0.0
    %112 = vmatprep.mubr.f32.mxu0 0.0
    %113 = vmatmul.mubr.f32.gmra.mxu0 %v37
    %v114 = vpop.f32.mrf.mxu0
    %v115 = vadd.f32 %v28, %v114
    %v116 = vpop.f32.mrf.mxu0
    %v117 = vadd.f32 %v32, %v116
    %118 = vmatprep.mubr.f32.mxu0 0.0
    %119 = vmatmul.mubr.f32.gmra.mxu0 %v40
    %v120 = vpop.f32.mrf.mxu0
    %v121 = vadd.f32 %v28, %v120
    %v122 = vpop.f32.mrf.mxu0
    %v123 = vadd.f32 %v32, %v122
    %124 = vmatprep.mubr.f32.mxu0 0.0
    %125 = vmatmul.mubr.f32.gmra.mxu0 %v43
    %v126 = vpop.f32.mrf.mxu0
    %v127 = vadd.f32 %v28, %v126
    %v128 = vpop.f32.mrf.mxu0
    %v129 = vadd.f32 %v32, %v128
    %130 = vmatprep.mubr.f32.mxu0 0.0
    %131 = vmatmul.mubr.f32.gmra.mxu0 %v46
    %v132 = vpop.f32.mrf.mxu0
    %v133 = vadd.f32 %v28, %v132
    %v134 = vpop.f32.mrf.mxu0
    %v135 = vadd.f32 %v32, %v134
    %136 = vdwg.mxu0
    %137 = vst [vmem:[#allocation2] sm:$0xff] %v115
    %138 = vst [vmem:[#allocation2 + $0x8] sm:$0xff] %v117
    %139 = vst [vmem:[#allocation2 + $0x10] sm:$0xff] %v121
    %140 = vst [vmem:[#allocation2 + $0x18] sm:$0xff] %v123
    %141 = vst [vmem:[#allocation2 + $0x20] sm:$0xff] %v127
    %142 = vst [vmem:[#allocation2 + $0x28] sm:$0xff] %v129
    %143 = vst [vmem:[#allocation2 + $0x30] sm:$0xff] %v133
    %144 = vst [vmem:[#allocation2 + $0x38] sm:$0xff] %v135
    // Predicated region
    $region14: #{tpu_custom_call.1} parent=1 // pred_check
      _
    $region15: #{tpu_custom_call.1} parent=1 // pred_check_branch
      %146 = sbr.rel (0) target = $region17
    $region16: #{tpu_custom_call.1} parent=1 // pred_region
      %s148 = ssub.s32 1024, 1024
      %149 = vsyncadd [#allocation3], %s148
      %s150 = sshll.u32 [#allocation2], 4
      %s151 = int_to_ptr.vmem [resolvable:$true] %s150
      %156 = dma.vmem_to_hbm [thread:$0]  %s151, 1024, %s3, [#allocation3], 256, 256, 16
    $region17: #{tpu_custom_call.1} parent=1 // pred_fallthru
      _
    // Predicated region
    $region18: #{tpu_custom_call.1} parent=1 // pred_check
      _
    $region19: #{tpu_custom_call.1} parent=1 // pred_check_branch
      %158 = sbr.rel (0) target = $region21
    $region20: #{tpu_custom_call.1} parent=1 // pred_region
      %159 = dma.done [#allocation3], 1024
    $region21: #{tpu_custom_call.1} parent=1 // pred_fallthru
      _
    %160 = vsyncpa [#allocation3], 1

</llo_original>
